<compile_context>
chip_gen: v7x
topology: tpu7x:2x2x1
jax: 0.10.0
libtpu: 0.0.40
codegen_flags: <defaults>
</compile_context>

<pallas_src>
import jax
import jax.numpy as jnp
from jax.experimental import pallas as pl
from jax.experimental.pallas import tpu as pltpu

_SUBLANE = 8


def _round_up(x: int, n: int) -> int:
    return ((x + n - 1) // n) * n


def _linear_kernel(x_ref, w_ref, b_ref, o_ref):
    # x_ref: [TM, K], w_ref: [K, N], b_ref: [1, N], o_ref: [TM, N]
    acc = jnp.dot(x_ref[...], w_ref[...], preferred_element_type=jnp.float32)
    o_ref[...] = (acc + b_ref[...].astype(jnp.float32)).astype(o_ref.dtype)


def _vmem_budgets() -> tuple[int, int]:
    """(tile budget, vmem_limit cap) gated on physical VMEM per TensorCore."""
    try:
        vmem_phys = int(pltpu.get_tpu_info().vmem_capacity_bytes)
    except Exception:
        vmem_phys = 64 * 1024 * 1024  # conservative (v7x-sized) fallback
    if vmem_phys >= 100 * 1024 * 1024:      # v5e / v6e: 128 MiB physical VMEM
        return 48 * 1024 * 1024, 96 * 1024 * 1024
    return 16 * 1024 * 1024, 32 * 1024 * 1024  # v7x: 64 MiB per TC


def classification_head(hidden_state: jax.Array, weight: jax.Array, bias: jax.Array,
                        *, block_m: int | None = None) -> jax.Array:
    """Pallas equivalent of ClassificationHead.forward.

    hidden_state: [batch, ..., in_features]
    weight:       [in_features, num_labels]   (transpose of torch nn.Linear.weight)
    bias:         [num_labels]
    returns:      [batch, ..., num_labels]
    """
    *lead, in_f = hidden_state.shape
    num_labels = weight.shape[1]
    dtype = hidden_state.dtype
    itemsize = jnp.dtype(dtype).itemsize

    x2d = hidden_state.reshape(-1, in_f)
    m = x2d.shape[0]
    b2d = bias.reshape(1, num_labels)  # cheap; pre-shape at init in a real training loop

    budget, vmem_cap = _vmem_budgets()

    if block_m is None:
        # W/b have a constant index_map -> DMA'd once and VMEM-resident; count them once.
        fixed = (in_f * num_labels + num_labels) * itemsize
        per_row = 2 * (in_f + num_labels) * itemsize          # x tile + out tile, double-buffered
        avail = max(budget - fixed, per_row * _SUBLANE)       # never go negative / collapse
        block_m = max(_SUBLANE, min(2048, avail // per_row))
        # TODO(synk): if `fixed` alone exceeds the VMEM budget (huge in_f * num_labels),
        # split K (in_f) into an "arbitrary" grid axis with an f32 accumulator instead of
        # shrinking the row tile.

    tm = min(int(block_m), _round_up(m, _SUBLANE))
    if m >= 2 * _SUBLANE:
        # Guarantee >= 2 row tiles so the "parallel" axis shards across both v7x TCs.
        tm = min(tm, _round_up(pl.cdiv(m, 2), _SUBLANE))
    tm = max(_SUBLANE, (tm // _SUBLANE) * _SUBLANE)

    grid_m = pl.cdiv(m, tm)  # ragged last tile handled by Pallas (no wrapper pad/slice)

    vmem_needed = (2 * (tm * in_f + tm * num_labels)
                   + 2 * (in_f * num_labels + num_labels)) * itemsize + (1 << 20)
    vmem_limit = int(min(max(vmem_needed, 16 * 1024 * 1024), vmem_cap))

    cost = pl.CostEstimate(
        flops=2 * m * in_f * num_labels,
        transcendentals=0,
        bytes_accessed=(m * in_f + in_f * num_labels + num_labels + m * num_labels) * itemsize,
    )

    out2d = pl.pallas_call(
        _linear_kernel,
        out_shape=jax.ShapeDtypeStruct((m, num_labels), dtype),
        grid=(grid_m,),
        in_specs=[
            pl.BlockSpec((tm, in_f), lambda i: (i, 0)),            # x: streamed row tiles
            pl.BlockSpec((in_f, num_labels), lambda i: (0, 0)),    # W: VMEM-resident
            pl.BlockSpec((1, num_labels), lambda i: (0, 0)),       # b: VMEM-resident
        ],
        out_specs=pl.BlockSpec((tm, num_labels), lambda i: (i, 0)),
        compiler_params=pltpu.CompilerParams(
            dimension_semantics=("parallel",),   # independent row tiles (2 TCs on v7x)
            vmem_limit_bytes=vmem_limit,
        ),
        cost_estimate=cost,
    )(x2d, weight, b2d)

    return out2d.reshape(*lead, num_labels)


if __name__ == "__main__":
    # config: hidden_size=32, head_scale=2 -> in_features=64, num_labels=4
    hidden_size = 32
    head_scale = 2
    num_labels = 4
    in_features = hidden_size * head_scale
    batch = 2

    key = jax.random.PRNGKey(0)
    kx, kw, kb, kx2 = jax.random.split(key, 4)

    hidden_state = jax.random.normal(kx, (batch, in_features), dtype=jnp.float32)
    # Deterministic synthetic parameters (same shapes nn.Linear would create).
    bound = 1.0 / (in_features ** 0.5)
    weight = jax.random.uniform(kw, (in_features, num_labels), jnp.float32, -bound, bound)
    bias = jax.random.uniform(kb, (num_labels,), jnp.float32, -bound, bound)

    logits = classification_head(hidden_state, weight, bias)
    logits = jax.block_until_ready(logits)
    ref = hidden_state @ weight + bias
    assert logits.shape == (batch, num_labels)
    assert jnp.allclose(logits, ref, atol=1e-5, rtol=1e-5)

    # Leading dims + ragged last tile + multi-tile grid (m=18, tm=8 -> grid=3, last tile 2 rows).
    hs2 = jax.random.normal(kx2, (2, 9, in_features), dtype=jnp.float32)
    logits2 = jax.block_until_ready(classification_head(hs2, weight, bias, block_m=8))
    ref2 = hs2 @ weight + bias
    assert logits2.shape == (2, 9, num_labels)
    assert jnp.allclose(logits2, ref2, atol=1e-5, rtol=1e-5)

    # Auto-tiled path with m not a multiple of 8 and >= 16 (exercises the grid_m>=2 cap).
    hs3 = jax.random.normal(kx, (17, in_features), dtype=jnp.float32)
    logits3 = jax.block_until_ready(classification_head(hs3, weight, bias))
    ref3 = hs3 @ weight + bias
    assert logits3.shape == (17, num_labels)
    assert jnp.allclose(logits3, ref3, atol=1e-5, rtol=1e-5)

    print("KERNEL_OK")
</pallas_src>

<mosaic_0001>
module attributes {stable_mosaic.version = 11 : i64} {
  func.func @_linear_kernel(%arg0: i32, %arg1: memref<8x64xf32, #tpu.memory_space<vmem>>, %arg2: memref<64x4xf32, #tpu.memory_space<vmem>>, %arg3: memref<1x4xf32, #tpu.memory_space<vmem>>, %arg4: memref<8x4xf32, #tpu.memory_space<vmem>>) attributes {dimension_semantics = [#tpu.dimension_semantics<parallel>], iteration_bounds = array<i64: 1>, scalar_prefetch = 0 : i64, scratch_operands = 0 : i64, tpu.core_type = #tpu.core_type<tc>, window_params = [{transform_indices = @transform_0, window_bounds = array<i64: 8, 64>}, {pipeline_mode = #tpu.pipeline_mode<synchronous>, transform_indices = @transform_1, window_bounds = array<i64: 64, 4>}, {pipeline_mode = #tpu.pipeline_mode<synchronous>, transform_indices = @transform_2, window_bounds = array<i64: 1, 4>}, {transform_indices = @transform_3, window_bounds = array<i64: 8, 4>}]} {
    %c0 = arith.constant 0 : index
    %c0_0 = arith.constant 0 : index
    %0 = vector.load %arg1[%c0, %c0_0] : memref<8x64xf32, #tpu.memory_space<vmem>>, vector<8x64xf32>
    %c0_1 = arith.constant 0 : index
    %c0_2 = arith.constant 0 : index
    %1 = vector.load %arg2[%c0_1, %c0_2] : memref<64x4xf32, #tpu.memory_space<vmem>>, vector<64x4xf32>
    %cst = arith.constant dense<0.000000e+00> : vector<8x4xf32>
    %2 = tpu.matmul %0, %1, %cst {dimension_numbers = #tpu.dot_dimension_numbers<[1], [0], [0], [1], [0, 0, 1, 1], [], []>} : vector<8x64xf32>, vector<64x4xf32>, vector<8x4xf32> -> vector<8x4xf32>
    %c0_3 = arith.constant 0 : index
    %c0_4 = arith.constant 0 : index
    %3 = vector.load %arg3[%c0_3, %c0_4] : memref<1x4xf32, #tpu.memory_space<vmem>>, vector<1x4xf32>
    %4 = vector.broadcast %3 : vector<1x4xf32> to vector<8x4xf32>
    %5 = arith.addf %2, %4 : vector<8x4xf32>
    %c0_5 = arith.constant 0 : index
    %c0_6 = arith.constant 0 : index
    %6 = vector.load %arg4[%c0_5, %c0_6] : memref<8x4xf32, #tpu.memory_space<vmem>>, vector<8x4xf32>
    tpu.vector_store %arg4[%c0_5, %c0_6], %5 {strides = array<i32>} : memref<8x4xf32, #tpu.memory_space<vmem>>, vector<8x4xf32>,
    return
  }
  func.func @transform_0(%arg0: i32) -> (i32, i32) {
    %c0_i32 = arith.constant 0 : i32
    %c0_i32_0 = arith.constant 0 : i32
    return %arg0, %c0_i32 : i32, i32
  }
  func.func @transform_1(%arg0: i32) -> (i32, i32) {
    %c0_i32 = arith.constant 0 : i32
    %c0_i32_0 = arith.constant 0 : i32
    %c0_i32_1 = arith.constant 0 : i32
    return %c0_i32, %c0_i32_0 : i32, i32
  }
  func.func @transform_2(%arg0: i32) -> (i32, i32) {
    %c0_i32 = arith.constant 0 : i32
    %c0_i32_0 = arith.constant 0 : i32
    %c0_i32_1 = arith.constant 0 : i32
    return %c0_i32, %c0_i32_0 : i32, i32
  }
  func.func @transform_3(%arg0: i32) -> (i32, i32) {
    %c0_i32 = arith.constant 0 : i32
    %c0_i32_0 = arith.constant 0 : i32
    return %arg0, %c0_i32 : i32, i32
  }
}

</mosaic_0001>

<llo_original>
// kernel: tpu_custom_call.1
$region0: #{tpu_custom_call.1}
  #allocation0 [shape = 'u32[]', space=smem, size = 0x4, offset = 0x4, fixed_abs, tag = 'smem constant byte address 0x4 - core index']
  #allocation1 [shape = 'u32[144,128]{1,0:T(1,128)}', space=vmem, size = 0x12000, scoped, tag = 'internal scratch']
  %s0 = inlined_call_operand.vmem [shape: f32[2,64], index: 0, kind: input, shape index: {}]
  %s1 = inlined_call_operand.vmem [shape: f32[64,4], index: 1, kind: input, shape index: {}]
  %s2 = inlined_call_operand.vmem [shape: f32[1,4], index: 2, kind: input, shape index: {}]
  %s3 = inlined_call_operand.hbm [shape: f32[2,4], index: 3, kind: output, shape index: {}]
  %s4 = sld [smem:[#allocation0]]
  $region22: #{tpu_custom_call.1} parent=0
    _
  %s6 = ssub.s32 1, %s4
  %s7 = scalar_select 0, %s6, %s4
  $region1: #{tpu_custom_call.1} parent=0
    #allocation2 [shape = 'u8[4096]{0}', space=vmem, size = 0x1000, scoped, tag = 'output window, operand 0, single buffered']
    #allocation3 [shape = 's32[1]{0}', space=sflag, size = 0x4, scoped, tag = 'scoped memory for tpu_custom_call.1']
    %8 = vsyncpa [#allocation3], 0
    // Predicated region
    $region2: #{tpu_custom_call.1} parent=1 // pred_check
      _
    $region3: #{tpu_custom_call.1} parent=1 // pred_check_branch
      %10 = sbr.rel (0) target = $region5
    $region4: #{tpu_custom_call.1} parent=1 // pred_region
      _
    $region5: #{tpu_custom_call.1} parent=1 // pred_fallthru
      _
    // Predicated region
    $region6: #{tpu_custom_call.1} parent=1 // pred_check
      _
    $region7: #{tpu_custom_call.1} parent=1 // pred_check_branch
      %12 = sbr.rel (0) target = $region9
    $region8: #{tpu_custom_call.1} parent=1 // pred_region
      _
    $region9: #{tpu_custom_call.1} parent=1 // pred_fallthru
      _
    // Predicated region
    $region10: #{tpu_custom_call.1} parent=1 // pred_check
      _
    $region11: #{tpu_custom_call.1} parent=1 // pred_check_branch
      %14 = sbr.rel (0) target = $region13
    $region12: #{tpu_custom_call.1} parent=1 // pred_region
      _
    $region13: #{tpu_custom_call.1} parent=1 // pred_fallthru
      _
    %v15 = vld [vmem:[%s0] sm:$0xff]
    %v16 = vld [vmem:[%s1] sm:$0xff]
    %v17 = vld [vmem:[%s1 + $0x8] sm:$0xff]
    %v18 = vld [vmem:[%s1 + $0x10] sm:$0xff]
    %v19 = vld [vmem:[%s1 + $0x18] sm:$0xff]
    %v20 = vld [vmem:[%s1 + $0x20] sm:$0xff]
    %v21 = vld [vmem:[%s1 + $0x28] sm:$0xff]
    %v22 = vld [vmem:[%s1 + $0x30] sm:$0xff]
    %v23 = vld [vmem:[%s1 + $0x38] sm:$0xff]
    %v24 = vld [vmem:[%s2] sm:$0x1]
    %v26 = vlaneseq
    %v27 = vshrl.u32 %v26, 7
    %v28 = vsub.s32 0, %v27
    %v29 = vrot.slane %v24, %v28
    %vm31 = vcmask 523264
    %v33 = vsel %vm31, %v15, 0
    %35 = vmatprep.subr.mxu0 0.0
    %36 = vmatpush1.msra.mxu0 %v16
    %37 = vmatprep.subr.mxu0 0.0
    %38 = vmatpush1.msra.mxu0 %v17
    %39 = vmatprep.subr.mxu0 0.0
    %40 = vmatpush1.msra.mxu0 %v18
    %41 = vmatprep.subr.mxu0 0.0
    %42 = vmatpush1.msra.mxu0 %v19
    %43 = vmatprep.subr.mxu0 0.0
    %44 = vmatpush1.msra.mxu0 %v20
    %45 = vmatprep.subr.mxu0 0.0
    %46 = vmatpush1.msra.mxu0 %v21
    %47 = vmatprep.subr.mxu0 0.0
    %48 = vmatpush1.msra.mxu0 %v22
    %49 = vmatprep.subr.mxu0 0.0
    %50 = vmatpush1.msra.mxu0 %v23
    %51 = vmatprep.subr.mxu0 0.0
    %52 = vmatpush1.msra.mxu0 0.0
    %53 = vmatprep.subr.mxu0 0.0
    %54 = vmatpush1.msra.mxu0 0.0
    %55 = vmatprep.subr.mxu0 0.0
    %56 = vmatpush1.msra.mxu0 0.0
    %57 = vmatprep.subr.mxu0 0.0
    %58 = vmatpush1.msra.mxu0 0.0
    %59 = vmatprep.subr.mxu0 0.0
    %60 = vmatpush1.msra.mxu0 0.0
    %61 = vmatprep.subr.mxu0 0.0
    %62 = vmatpush1.msra.mxu0 0.0
    %63 = vmatprep.subr.mxu0 0.0
    %64 = vmatpush1.msra.mxu0 0.0
    %65 = vmatprep.subr.mxu0 0.0
    %66 = vmatpush1.msra.mxu0 0.0
    %67 = vmatprep.subr.mxu0 0.0
    %68 = vmatpush1.msra.mxu0 0.0
    %69 = vmatprep.subr.mxu0 0.0
    %70 = vmatpush1.msra.mxu0 0.0
    %71 = vmatprep.subr.mxu0 0.0
    %72 = vmatpush1.msra.mxu0 0.0
    %73 = vmatprep.subr.mxu0 0.0
    %74 = vmatpush1.msra.mxu0 0.0
    %75 = vmatprep.subr.mxu0 0.0
    %76 = vmatpush1.msra.mxu0 0.0
    %77 = vmatprep.subr.mxu0 0.0
    %78 = vmatpush1.msra.mxu0 0.0
    %79 = vmatprep.subr.mxu0 0.0
    %80 = vmatpush1.msra.mxu0 0.0
    %81 = vmatprep.subr.mxu0 0.0
    %82 = vmatpush1.msra.mxu0 0.0
    %83 = vmatprep.subr.mxu0 0.0
    %84 = vmatpush1.msra.mxu0 0.0
    %85 = vmatprep.subr.mxu0 0.0
    %86 = vmatpush1.msra.mxu0 0.0
    %87 = vmatprep.subr.mxu0 0.0
    %88 = vmatpush1.msra.mxu0 0.0
    %89 = vmatprep.subr.mxu0 0.0
    %90 = vmatpush1.msra.mxu0 0.0
    %91 = vmatprep.subr.mxu0 0.0
    %92 = vmatpush1.msra.mxu0 0.0
    %93 = vmatprep.subr.mxu0 0.0
    %94 = vmatpush1.msra.mxu0 0.0
    %95 = vmatprep.subr.mxu0 0.0
    %96 = vmatpush1.msra.mxu0 0.0
    %97 = vmatprep.subr.mxu0 0.0
    %98 = vmatpush1.msra.mxu0 0.0
    %99 = vmatprep.mubr.f32.mxu0 0.0
    %100 = vmatmul.mubr.f32.gmra.mrb[0].mxu0 %v33
    %v101 = vpop.f32.mrb[0].mxu0
    %v102 = vadd.f32 %v29, %v101
    %v103 = vpop.f32.mrb[0].mxu0
    %104 = vdwg.mxu0
    %vm105 = vcmask 31744
    %106 = vst.msk [vmem:[#allocation2] sm:$0xff] %vm105, %v102
    // Predicated region
    $region14: #{tpu_custom_call.1} parent=1 // pred_check
      _
    $region15: #{tpu_custom_call.1} parent=1 // pred_check_branch
      %108 = sbr.rel (0) target = $region17
    $region16: #{tpu_custom_call.1} parent=1 // pred_region
      %s110 = ssub.s32 128, 32
      %111 = vsyncadd [#allocation3], %s110
      %s112 = sshll.u32 [#allocation2], 4
      %s113 = int_to_ptr.vmem [resolvable:$true] %s112
      %118 = dma.vmem_to_hbm [thread:$0]  %s113, 32, %s3, [#allocation3], 32, 32, 2
    $region17: #{tpu_custom_call.1} parent=1 // pred_fallthru
      _
    // Predicated region
    $region18: #{tpu_custom_call.1} parent=1 // pred_check
      _
    $region19: #{tpu_custom_call.1} parent=1 // pred_check_branch
      %120 = sbr.rel (0) target = $region21
    $region20: #{tpu_custom_call.1} parent=1 // pred_region
      %121 = dma.done [#allocation3], 128
    $region21: #{tpu_custom_call.1} parent=1 // pred_fallthru
      _
    %122 = vsyncpa [#allocation3], 1

</llo_original>
